<compile_context>
chip_gen: v7x
topology: tpu7x:2x2x1
jax: 0.10.0
libtpu: 0.0.40
codegen_flags: <defaults>
</compile_context>

<pallas_src>
import functools

import jax
import jax.numpy as jnp
from jax.experimental import pallas as pl
from jax.experimental.pallas import tpu as pltpu

_LANE = 128
_SUBLANE = 8
_MIN_CORE_TILE = 512  # below this, don't bother splitting for 2 TensorCores


def mlp_kernel(x_ref,
               w1_ref, b1_ref,
               w2_ref, b2_ref,
               w3_ref, b3_ref,
               w4_ref, b4_ref,
               o_ref,
               *, matmul_dtype):
    def mm(a, w_ref):
        return jnp.dot(a.astype(matmul_dtype),
                       w_ref[...].astype(matmul_dtype),
                       preferred_element_type=jnp.float32)

    # Layer 1: Linear(15 -> 64, lane-padded to 128) + ReLU.  K=15 contraction
    # is handled directly (no input padding).
    h = jnp.maximum(mm(x_ref[...], w1_ref) + b1_ref[...], 0.0)
    # Layer 2: Linear + ReLU
    h = jnp.maximum(mm(h, w2_ref) + b2_ref[...], 0.0)
    # Layer 3: Linear + ReLU
    h = jnp.maximum(mm(h, w3_ref) + b3_ref[...], 0.0)
    # Layer 4: num_classes == 1 -> VPU multiply + lane reduction (XLU) instead
    # of an MXU matmul producing a single useful column.  Padded hidden
    # columns are exactly 0 and w4 padded entries are 0, so this is exact.
    logit = jnp.sum(h * w4_ref[...], axis=-1, keepdims=True) + b4_ref[...]
    o_ref[...] = jax.nn.sigmoid(logit).astype(o_ref.dtype)


def _round_up(n, m):
    return ((n + m - 1) // m) * m


def _pad2(a, rows, cols):
    a = jnp.asarray(a, jnp.float32).reshape(-1, a.shape[-1])
    if a.shape == (rows, cols):
        return a
    return jnp.zeros((rows, cols), jnp.float32).at[:a.shape[0], :a.shape[1]].set(a)


def prepare_params(params):
    """Pad/lay out the weights once (outside the per-call hot path).

    Hidden width is lane-padded to 128 (zero padding is exact: padded weight
    rows/cols are 0 and ReLU(0)=0, so padded hidden columns stay 0).  The
    input (K=15) and output (N=1) dims are left unpadded.
    """
    in_size, hidden = params["w1"].shape
    num_classes = params["w4"].shape[1]
    assert num_classes == 1, "GameContextMLP spec uses num_classes=1 (BCE head)"
    hid_p = _round_up(hidden, _LANE)
    return {
        "in_size": in_size,
        "hidden": hidden,
        "hid_p": hid_p,
        "num_classes": num_classes,
        "w1": _pad2(params["w1"], in_size, hid_p),
        "b1": _pad2(params["b1"], 1, hid_p),
        "w2": _pad2(params["w2"], hid_p, hid_p),
        "b2": _pad2(params["b2"], 1, hid_p),
        "w3": _pad2(params["w3"], hid_p, hid_p),
        "b3": _pad2(params["b3"], 1, hid_p),
        # Final layer stored as a (1, hid_p) row vector for the lane reduction.
        "w4": _pad2(jnp.asarray(params["w4"], jnp.float32).T, 1, hid_p),
        "b4": jnp.asarray(params["b4"], jnp.float32).reshape(1, 1),
    }


def game_context_mlp(x, prepared, *, block_b=1024, use_bf16_matmul=False):
    """x: (B, input_size) float32.  prepared: output of prepare_params()."""
    B, in_size = x.shape
    assert in_size == prepared["in_size"]
    hidden = prepared["hidden"]
    hid_p = prepared["hid_p"]
    num_classes = prepared["num_classes"]

    # Batch tile: big by default, clamped for small batches.  For medium
    # batches that would otherwise fit in one tile, split into >= 2 grid steps
    # so both v7x TensorCores get work (dimension_semantics=("parallel",)).
    b_rows = _round_up(B, _SUBLANE)
    eff_block = min(block_b, b_rows)
    if eff_block == b_rows and b_rows >= 2 * _MIN_CORE_TILE:
        eff_block = _round_up(pl.cdiv(b_rows, 2), _SUBLANE)
    b_pad = _round_up(B, eff_block)
    grid = (b_pad // eff_block,)

    # Only batch-dim padding (no lane padding of the input features).
    x = jnp.asarray(x, jnp.float32)
    if b_pad != B:
        x = jnp.zeros((b_pad, in_size), jnp.float32).at[:B, :].set(x)

    # x / out tiled over batch; weights & biases replicated (constant block).
    x_spec = pl.BlockSpec((eff_block, in_size), lambda i: (i, 0))
    out_spec = pl.BlockSpec((eff_block, num_classes), lambda i: (i, 0))

    def rep(shape):
        return pl.BlockSpec(shape, lambda i: (0, 0))

    in_specs = [
        x_spec,
        rep((in_size, hid_p)), rep((1, hid_p)),
        rep((hid_p, hid_p)),   rep((1, hid_p)),
        rep((hid_p, hid_p)),   rep((1, hid_p)),
        rep((1, hid_p)),       rep((1, 1)),
    ]

    # Advisory cost estimate (real, unpadded FLOP/byte counts).
    flops = 2 * B * (in_size * hidden + 2 * hidden * hidden
                     + hidden * num_classes)
    transcendentals = B * num_classes  # one sigmoid per output element
    bytes_accessed = 4 * (B * in_size + B * num_classes
                          + in_size * hid_p + 2 * hid_p * hid_p
                          + hid_p + 3 * hid_p + 1)

    matmul_dtype = jnp.bfloat16 if use_bf16_matmul else jnp.float32
    kernel = functools.partial(mlp_kernel, matmul_dtype=matmul_dtype)

    out = pl.pallas_call(
        kernel,
        out_shape=jax.ShapeDtypeStruct((b_pad, num_classes), jnp.float32),
        grid=grid,
        in_specs=in_specs,
        out_specs=out_spec,
        compiler_params=pltpu.CompilerParams(
            dimension_semantics=("parallel",)),
        cost_estimate=pl.CostEstimate(
            flops=flops,
            transcendentals=transcendentals,
            bytes_accessed=bytes_accessed),
    )(x,
      prepared["w1"], prepared["b1"],
      prepared["w2"], prepared["b2"],
      prepared["w3"], prepared["b3"],
      prepared["w4"], prepared["b4"])

    return out if b_pad == B else out[:B]


def init_params(key, input_size=15, hidden_size=64, num_classes=1):
    """Deterministic init mimicking PyTorch nn.Linear default (U(-1/sqrt(fan_in), +))."""
    dims = [(input_size, hidden_size),
            (hidden_size, hidden_size),
            (hidden_size, hidden_size),
            (hidden_size, num_classes)]
    params = {}
    for idx, (fan_in, fan_out) in enumerate(dims, start=1):
        key, kw, kb = jax.random.split(key, 3)
        bound = 1.0 / jnp.sqrt(jnp.float32(fan_in))
        params[f"w{idx}"] = jax.random.uniform(
            kw, (fan_in, fan_out), jnp.float32, -bound, bound)
        params[f"b{idx}"] = jax.random.uniform(
            kb, (1, fan_out), jnp.float32, -bound, bound)
    return params


def reference_mlp(x, params):
    h = jnp.maximum(x @ params["w1"] + params["b1"], 0.0)
    h = jnp.maximum(h @ params["w2"] + params["b2"], 0.0)
    h = jnp.maximum(h @ params["w3"] + params["b3"], 0.0)
    return jax.nn.sigmoid(h @ params["w4"] + params["b4"])


if __name__ == "__main__":
    key = jax.random.PRNGKey(0)
    key, kx = jax.random.split(key)

    B, INPUT, HIDDEN, NUM_CLASSES = 16, 15, 64, 1
    x = jax.random.normal(kx, (B, INPUT), jnp.float32)
    params = init_params(key, INPUT, HIDDEN, NUM_CLASSES)

    prepared = prepare_params(params)
    out = game_context_mlp(x, prepared)
    out = jax.block_until_ready(out)

    ref = reference_mlp(x, params)
    assert out.shape == (B, NUM_CLASSES)
    assert jnp.allclose(out, ref, atol=1e-5, rtol=1e-5), "mismatch vs reference"

    print("KERNEL_OK")
</pallas_src>

<mosaic_0001>
module attributes {stable_mosaic.version = 11 : i64} {
  func.func @mlp_kernel(%arg0: i32, %arg1: memref<16x15xf32, #tpu.memory_space<vmem>>, %arg2: memref<15x128xf32, #tpu.memory_space<vmem>>, %arg3: memref<1x128xf32, #tpu.memory_space<vmem>>, %arg4: memref<128x128xf32, #tpu.memory_space<vmem>>, %arg5: memref<1x128xf32, #tpu.memory_space<vmem>>, %arg6: memref<128x128xf32, #tpu.memory_space<vmem>>, %arg7: memref<1x128xf32, #tpu.memory_space<vmem>>, %arg8: memref<1x128xf32, #tpu.memory_space<vmem>>, %arg9: memref<1x1xf32, #tpu.memory_space<vmem>>, %arg10: memref<16x1xf32, #tpu.memory_space<vmem>>) attributes {dimension_semantics = [#tpu.dimension_semantics<parallel>], iteration_bounds = array<i64: 1>, scalar_prefetch = 0 : i64, scratch_operands = 0 : i64, tpu.core_type = #tpu.core_type<tc>, window_params = [{transform_indices = @transform_0, window_bounds = array<i64: 16, 15>}, {pipeline_mode = #tpu.pipeline_mode<synchronous>, transform_indices = @transform_1, window_bounds = array<i64: 15, 128>}, {pipeline_mode = #tpu.pipeline_mode<synchronous>, transform_indices = @transform_2, window_bounds = array<i64: 1, 128>}, {pipeline_mode = #tpu.pipeline_mode<synchronous>, transform_indices = @transform_3, window_bounds = array<i64: 128, 128>}, {pipeline_mode = #tpu.pipeline_mode<synchronous>, transform_indices = @transform_4, window_bounds = array<i64: 1, 128>}, {pipeline_mode = #tpu.pipeline_mode<synchronous>, transform_indices = @transform_5, window_bounds = array<i64: 128, 128>}, {pipeline_mode = #tpu.pipeline_mode<synchronous>, transform_indices = @transform_6, window_bounds = array<i64: 1, 128>}, {pipeline_mode = #tpu.pipeline_mode<synchronous>, transform_indices = @transform_7, window_bounds = array<i64: 1, 128>}, {pipeline_mode = #tpu.pipeline_mode<synchronous>, transform_indices = @transform_8, window_bounds = array<i64: 1, 1>}, {transform_indices = @transform_9, window_bounds = array<i64: 16, 1>}]} {
    %c0 = arith.constant 0 : index
    %c0_0 = arith.constant 0 : index
    %0 = vector.load %arg1[%c0, %c0_0] : memref<16x15xf32, #tpu.memory_space<vmem>>, vector<16x15xf32>
    %c0_1 = arith.constant 0 : index
    %c0_2 = arith.constant 0 : index
    %1 = vector.load %arg2[%c0_1, %c0_2] : memref<15x128xf32, #tpu.memory_space<vmem>>, vector<15x128xf32>
    %cst = arith.constant dense<0.000000e+00> : vector<16x128xf32>
    %2 = tpu.matmul %0, %1, %cst {dimension_numbers = #tpu.dot_dimension_numbers<[1], [0], [0], [1], [0, 0, 1, 1], [], []>} : vector<16x15xf32>, vector<15x128xf32>, vector<16x128xf32> -> vector<16x128xf32>
    %c0_3 = arith.constant 0 : index
    %c0_4 = arith.constant 0 : index
    %3 = vector.load %arg3[%c0_3, %c0_4] : memref<1x128xf32, #tpu.memory_space<vmem>>, vector<1x128xf32>
    %4 = vector.broadcast %3 : vector<1x128xf32> to vector<16x128xf32>
    %5 = arith.addf %2, %4 : vector<16x128xf32>
    %cst_5 = arith.constant 0.000000e+00 : f32
    %6 = vector.broadcast %cst_5 : f32 to vector<16x128xf32>
    %7 = arith.maximumf %5, %6 : vector<16x128xf32>
    %c0_6 = arith.constant 0 : index
    %c0_7 = arith.constant 0 : index
    %8 = vector.load %arg4[%c0_6, %c0_7] : memref<128x128xf32, #tpu.memory_space<vmem>>, vector<128x128xf32>
    %cst_8 = arith.constant dense<0.000000e+00> : vector<16x128xf32>
    %9 = tpu.matmul %7, %8, %cst_8 {dimension_numbers = #tpu.dot_dimension_numbers<[1], [0], [0], [1], [0, 0, 1, 1], [], []>} : vector<16x128xf32>, vector<128x128xf32>, vector<16x128xf32> -> vector<16x128xf32>
    %c0_9 = arith.constant 0 : index
    %c0_10 = arith.constant 0 : index
    %10 = vector.load %arg5[%c0_9, %c0_10] : memref<1x128xf32, #tpu.memory_space<vmem>>, vector<1x128xf32>
    %11 = vector.broadcast %10 : vector<1x128xf32> to vector<16x128xf32>
    %12 = arith.addf %9, %11 : vector<16x128xf32>
    %cst_11 = arith.constant 0.000000e+00 : f32
    %13 = vector.broadcast %cst_11 : f32 to vector<16x128xf32>
    %14 = arith.maximumf %12, %13 : vector<16x128xf32>
    %c0_12 = arith.constant 0 : index
    %c0_13 = arith.constant 0 : index
    %15 = vector.load %arg6[%c0_12, %c0_13] : memref<128x128xf32, #tpu.memory_space<vmem>>, vector<128x128xf32>
    %cst_14 = arith.constant dense<0.000000e+00> : vector<16x128xf32>
    %16 = tpu.matmul %14, %15, %cst_14 {dimension_numbers = #tpu.dot_dimension_numbers<[1], [0], [0], [1], [0, 0, 1, 1], [], []>} : vector<16x128xf32>, vector<128x128xf32>, vector<16x128xf32> -> vector<16x128xf32>
    %c0_15 = arith.constant 0 : index
    %c0_16 = arith.constant 0 : index
    %17 = vector.load %arg7[%c0_15, %c0_16] : memref<1x128xf32, #tpu.memory_space<vmem>>, vector<1x128xf32>
    %18 = vector.broadcast %17 : vector<1x128xf32> to vector<16x128xf32>
    %19 = arith.addf %16, %18 : vector<16x128xf32>
    %cst_17 = arith.constant 0.000000e+00 : f32
    %20 = vector.broadcast %cst_17 : f32 to vector<16x128xf32>
    %21 = arith.maximumf %19, %20 : vector<16x128xf32>
    %c0_18 = arith.constant 0 : index
    %c0_19 = arith.constant 0 : index
    %22 = vector.load %arg8[%c0_18, %c0_19] : memref<1x128xf32, #tpu.memory_space<vmem>>, vector<1x128xf32>
    %23 = vector.broadcast %22 : vector<1x128xf32> to vector<16x128xf32>
    %24 = arith.mulf %21, %23 : vector<16x128xf32>
    %cst_20 = arith.constant dense<0.000000e+00> : vector<16xf32>
    %25 = vector.multi_reduction <add>, %24, %cst_20 [1] : vector<16x128xf32> to vector<16xf32>
    %26 = vector.shape_cast %25 : vector<16xf32> to vector<16x1xf32>
    %c0_21 = arith.constant 0 : index
    %c0_22 = arith.constant 0 : index
    %27 = vector.load %arg9[%c0_21, %c0_22] : memref<1x1xf32, #tpu.memory_space<vmem>>, vector<1x1xf32>
    %28 = vector.broadcast %27 : vector<1x1xf32> to vector<16x1xf32>
    %29 = arith.addf %26, %28 : vector<16x1xf32>
    %30 = arith.negf %29 : vector<16x1xf32>
    %31 = math.exp %30 : vector<16x1xf32>
    %cst_23 = arith.constant 1.000000e+00 : f32
    %32 = vector.broadcast %cst_23 : f32 to vector<16x1xf32>
    %33 = arith.addf %32, %31 : vector<16x1xf32>
    %34 = arith.divf %32, %33 : vector<16x1xf32>
    %c0_24 = arith.constant 0 : index
    %c0_25 = arith.constant 0 : index
    %35 = vector.load %arg10[%c0_24, %c0_25] : memref<16x1xf32, #tpu.memory_space<vmem>>, vector<16x1xf32>
    tpu.vector_store %arg10[%c0_24, %c0_25], %34 {strides = array<i32>} : memref<16x1xf32, #tpu.memory_space<vmem>>, vector<16x1xf32>,
    return
  }
  func.func @transform_0(%arg0: i32) -> (i32, i32) {
    %c0_i32 = arith.constant 0 : i32
    %c0_i32_0 = arith.constant 0 : i32
    return %arg0, %c0_i32 : i32, i32
  }
  func.func @transform_1(%arg0: i32) -> (i32, i32) {
    %c0_i32 = arith.constant 0 : i32
    %c0_i32_0 = arith.constant 0 : i32
    %c0_i32_1 = arith.constant 0 : i32
    return %c0_i32, %c0_i32_0 : i32, i32
  }
  func.func @transform_2(%arg0: i32) -> (i32, i32) {
    %c0_i32 = arith.constant 0 : i32
    %c0_i32_0 = arith.constant 0 : i32
    %c0_i32_1 = arith.constant 0 : i32
    return %c0_i32, %c0_i32_0 : i32, i32
  }
  func.func @transform_3(%arg0: i32) -> (i32, i32) {
    %c0_i32 = arith.constant 0 : i32
    %c0_i32_0 = arith.constant 0 : i32
    %c0_i32_1 = arith.constant 0 : i32
    return %c0_i32, %c0_i32_0 : i32, i32
  }
  func.func @transform_4(%arg0: i32) -> (i32, i32) {
    %c0_i32 = arith.constant 0 : i32
    %c0_i32_0 = arith.constant 0 : i32
    %c0_i32_1 = arith.constant 0 : i32
    return %c0_i32, %c0_i32_0 : i32, i32
  }
  func.func @transform_5(%arg0: i32) -> (i32, i32) {
    %c0_i32 = arith.constant 0 : i32
    %c0_i32_0 = arith.constant 0 : i32
    %c0_i32_1 = arith.constant 0 : i32
    return %c0_i32, %c0_i32_0 : i32, i32
  }
  func.func @transform_6(%arg0: i32) -> (i32, i32) {
    %c0_i32 = arith.constant 0 : i32
    %c0_i32_0 = arith.constant 0 : i32
    %c0_i32_1 = arith.constant 0 : i32
    return %c0_i32, %c0_i32_0 : i32, i32
  }
  func.func @transform_7(%arg0: i32) -> (i32, i32) {
    %c0_i32 = arith.constant 0 : i32
    %c0_i32_0 = arith.constant 0 : i32
    %c0_i32_1 = arith.constant 0 : i32
    return %c0_i32, %c0_i32_0 : i32, i32
  }
  func.func @transform_8(%arg0: i32) -> (i32, i32) {
    %c0_i32 = arith.constant 0 : i32
    %c0_i32_0 = arith.constant 0 : i32
    %c0_i32_1 = arith.constant 0 : i32
    return %c0_i32, %c0_i32_0 : i32, i32
  }
  func.func @transform_9(%arg0: i32) -> (i32, i32) {
    %c0_i32 = arith.constant 0 : i32
    %c0_i32_0 = arith.constant 0 : i32
    return %arg0, %c0_i32 : i32, i32
  }
}

</mosaic_0001>

<llo_original>
// kernel: tpu_custom_call.1
$region0: #{tpu_custom_call.1}
  #allocation0 [shape = 'u32[]', space=smem, size = 0x4, offset = 0x4, fixed_abs, tag = 'smem constant byte address 0x4 - core index']
  #allocation1 [shape = 'u32[144,128]{1,0:T(1,128)}', space=vmem, size = 0x12000, scoped, tag = 'internal scratch']
  #allocation2 [shape = 'f32[1,1]{1,0:T(1,128)S(1)}', space=vmem, size = 0x200, scoped, tag = 'scoped memory for tpu_custom_call.1']
  %s0 = inlined_call_operand.hbm [shape: f32[16,15], index: 0, kind: input, shape index: {}]
  %s1 = inlined_call_operand.hbm [shape: f32[15,128], index: 1, kind: input, shape index: {}]
  %s2 = inlined_call_operand.vmem [shape: f32[1,128], index: 2, kind: input, shape index: {}]
  %s3 = inlined_call_operand.hbm [shape: f32[128,128], index: 3, kind: input, shape index: {}]
  %s4 = inlined_call_operand.vmem [shape: f32[1,128], index: 4, kind: input, shape index: {}]
  %s5 = inlined_call_operand.hbm [shape: f32[128,128], index: 5, kind: input, shape index: {}]
  %s6 = inlined_call_operand.vmem [shape: f32[1,128], index: 6, kind: input, shape index: {}]
  %s7 = inlined_call_operand.vmem [shape: f32[1,128], index: 7, kind: input, shape index: {}]
  %s8 = inlined_call_operand.<no memory space> [shape: f32[1,1], index: 8, kind: input, shape index: {}]
  %s9 = inlined_call_operand.vmem [shape: f32[16,1], index: 9, kind: output, shape index: {}]
  %s10 = sld [smem:[#allocation0]]
  $region62: #{tpu_custom_call.1} parent=0
    _
  %s12 = ssub.s32 1, %s10
  %s13 = scalar_select 0, %s12, %s10
  %v14 = vstv %s8
  %15 = vst [vmem:[#allocation2] sm:$0x1] %v14
  $region1: #{tpu_custom_call.1} parent=0
    #allocation3 [shape = 'u8[8192]{0}', space=vmem, size = 0x2000, scoped, tag = 'input window, operand 0, single buffered']
    #allocation4 [shape = 's32[1]{0}', space=sflag, size = 0x4, scoped, tag = 'scoped memory for tpu_custom_call.1']
    #allocation5 [shape = 'u8[8192]{0}', space=vmem, size = 0x2000, scoped, tag = 'input window, operand 1, single buffered']
    #allocation6 [shape = 's32[1]{0}', space=sflag, size = 0x4, scoped, tag = 'scoped memory for tpu_custom_call.1']
    #allocation7 [shape = 'u8[65536]{0}', space=vmem, size = 0x10000, scoped, tag = 'input window, operand 3, single buffered']
    #allocation8 [shape = 'u8[65536]{0}', space=vmem, size = 0x10000, scoped, tag = 'input window, operand 5, single buffered']
    #allocation9 [shape = 's32[1]{0}', space=sflag, size = 0x4, scoped, tag = 'scoped memory for tpu_custom_call.1']
    %16 = vsyncpa [#allocation4], 0
    %17 = vsyncpa [#allocation6], 0
    %18 = vsyncpa [#allocation9], 0
    // Predicated region
    $region2: #{tpu_custom_call.1} parent=1 // pred_check
      _
    $region3: #{tpu_custom_call.1} parent=1 // pred_check_branch
      %20 = sbr.rel (0) target = $region5
    $region4: #{tpu_custom_call.1} parent=1 // pred_region
      %s22 = ssub.s32 256, 256
      %23 = vsyncadd [#allocation4], %s22
      %s24 = sshll.u32 [#allocation3], 4
      %s25 = int_to_ptr.vmem [resolvable:$true] %s24
      %30 = dma.hbm_to_vmem [thread:$0]  %s0, 256, %s25, [#allocation4], 128, 128, 8
    $region5: #{tpu_custom_call.1} parent=1 // pred_fallthru
      _
    // Predicated region
    $region6: #{tpu_custom_call.1} parent=1 // pred_check
      _
    $region7: #{tpu_custom_call.1} parent=1 // pred_check_branch
      %32 = sbr.rel (0) target = $region9
    $region8: #{tpu_custom_call.1} parent=1 // pred_region
      %s34 = ssub.s32 256, 256
      %35 = vsyncadd [#allocation6], %s34
      %s36 = sshll.u32 [#allocation5], 4
      %s37 = int_to_ptr.vmem [resolvable:$true] %s36
      %42 = dma.hbm_to_vmem [thread:$0]  %s1, 256, %s37, [#allocation6], 128, 128, 8
    $region9: #{tpu_custom_call.1} parent=1 // pred_fallthru
      _
    // Predicated region
    $region10: #{tpu_custom_call.1} parent=1 // pred_check
      _
    $region11: #{tpu_custom_call.1} parent=1 // pred_check_branch
      %44 = sbr.rel (0) target = $region13
    $region12: #{tpu_custom_call.1} parent=1 // pred_region
      _
    $region13: #{tpu_custom_call.1} parent=1 // pred_fallthru
      _
    // Predicated region
    $region14: #{tpu_custom_call.1} parent=1 // pred_check
      _
    $region15: #{tpu_custom_call.1} parent=1 // pred_check_branch
      %46 = sbr.rel (0) target = $region17
    $region16: #{tpu_custom_call.1} parent=1 // pred_region
      %s48 = ssub.s32 2048, 2048
      %49 = vsyncadd [#allocation6], %s48
      %s50 = sshll.u32 [#allocation7], 4
      %s51 = int_to_ptr.vmem [resolvable:$true] %s50
      %56 = dma.hbm_to_vmem [thread:$0]  %s3, 2048, %s51, [#allocation6], 128, 128, 8
    $region17: #{tpu_custom_call.1} parent=1 // pred_fallthru
      _
    // Predicated region
    $region18: #{tpu_custom_call.1} parent=1 // pred_check
      _
    $region19: #{tpu_custom_call.1} parent=1 // pred_check_branch
      %58 = sbr.rel (0) target = $region21
    $region20: #{tpu_custom_call.1} parent=1 // pred_region
      _
    $region21: #{tpu_custom_call.1} parent=1 // pred_fallthru
      _
    // Predicated region
    $region22: #{tpu_custom_call.1} parent=1 // pred_check
      _
    $region23: #{tpu_custom_call.1} parent=1 // pred_check_branch
      %60 = sbr.rel (0) target = $region25
    $region24: #{tpu_custom_call.1} parent=1 // pred_region
      %s62 = ssub.s32 2048, 2048
      %63 = vsyncadd [#allocation9], %s62
      %s64 = sshll.u32 [#allocation8], 4
      %s65 = int_to_ptr.vmem [resolvable:$true] %s64
      %70 = dma.hbm_to_vmem [thread:$0]  %s5, 2048, %s65, [#allocation9], 128, 128, 8
    $region25: #{tpu_custom_call.1} parent=1 // pred_fallthru
      _
    // Predicated region
    $region26: #{tpu_custom_call.1} parent=1 // pred_check
      _
    $region27: #{tpu_custom_call.1} parent=1 // pred_check_branch
      %72 = sbr.rel (0) target = $region29
    $region28: #{tpu_custom_call.1} parent=1 // pred_region
      _
    $region29: #{tpu_custom_call.1} parent=1 // pred_fallthru
      _
    // Predicated region
    $region30: #{tpu_custom_call.1} parent=1 // pred_check
      _
    $region31: #{tpu_custom_call.1} parent=1 // pred_check_branch
      %74 = sbr.rel (0) target = $region33
    $region32: #{tpu_custom_call.1} parent=1 // pred_region
      _
    $region33: #{tpu_custom_call.1} parent=1 // pred_fallthru
      _
    // Predicated region
    $region34: #{tpu_custom_call.1} parent=1 // pred_check
      _
    $region35: #{tpu_custom_call.1} parent=1 // pred_check_branch
      %76 = sbr.rel (0) target = $region37
    $region36: #{tpu_custom_call.1} parent=1 // pred_region
      _
    $region37: #{tpu_custom_call.1} parent=1 // pred_fallthru
      _
    // Predicated region
    $region38: #{tpu_custom_call.1} parent=1 // pred_check
      _
    $region39: #{tpu_custom_call.1} parent=1 // pred_check_branch
      %78 = sbr.rel (0) target = $region41
    $region40: #{tpu_custom_call.1} parent=1 // pred_region
      %79 = dma.done [#allocation4], 256
    $region41: #{tpu_custom_call.1} parent=1 // pred_fallthru
      _
    // Predicated region
    $region42: #{tpu_custom_call.1} parent=1 // pred_check
      _
    $region43: #{tpu_custom_call.1} parent=1 // pred_check_branch
      %81 = sbr.rel (0) target = $region45
    $region44: #{tpu_custom_call.1} parent=1 // pred_region
      %82 = dma.done [#allocation6], 256
    $region45: #{tpu_custom_call.1} parent=1 // pred_fallthru
      _
    // Predicated region
    $region46: #{tpu_custom_call.1} parent=1 // pred_check
      _
    $region47: #{tpu_custom_call.1} parent=1 // pred_check_branch
      %84 = sbr.rel (0) target = $region49
    $region48: #{tpu_custom_call.1} parent=1 // pred_region
      %85 = dma.done [#allocation6], 2048
    $region49: #{tpu_custom_call.1} parent=1 // pred_fallthru
      _
    // Predicated region
    $region50: #{tpu_custom_call.1} parent=1 // pred_check
      _
    $region51: #{tpu_custom_call.1} parent=1 // pred_check_branch
      %87 = sbr.rel (0) target = $region53
    $region52: #{tpu_custom_call.1} parent=1 // pred_region
      %88 = dma.done [#allocation9], 2048
    $region53: #{tpu_custom_call.1} parent=1 // pred_fallthru
      _
    %v89 = vld [vmem:[#allocation3] sm:$0xff]
    %v90 = vld [vmem:[#allocation3 + $0x8] sm:$0xff]
    %v91 = vld [vmem:[#allocation5] sm:$0xff]
    %v92 = vld [vmem:[#allocation5 + $0x8] sm:$0x7f]
    %v93 = vld [vmem:[%s2] sm:$0x1]
    %v95 = vlaneseq
    %v96 = vshrl.u32 %v95, 7
    %v97 = vsub.s32 0, %v96
    %v98 = vrot.slane %v93, %v97
    %vm100 = vcmask 121856
    %v102 = vsel %vm100, %v89, 0
    %v105 = vsel %vm100, %v90, 0
    %vm107 = vcmask 1046528
    %v109 = vsel %vm107, %v92, 0
    %111 = vmatprep.subr.mxu0 0.0
    %112 = vmatpush1.msra.mxu0 %v91
    %113 = vmatprep.subr.mxu0 0.0
    %114 = vmatpush1.msra.mxu0 %v109
    %115 = vmatprep.subr.mxu0 0.0
    %116 = vmatpush1.msra.mxu0 0.0
    %117 = vmatprep.subr.mxu0 0.0
    %118 = vmatpush1.msra.mxu0 0.0
    %119 = vmatprep.subr.mxu0 0.0
    %120 = vmatpush1.msra.mxu0 0.0
    %121 = vmatprep.subr.mxu0 0.0
    %122 = vmatpush1.msra.mxu0 0.0
    %123 = vmatprep.subr.mxu0 0.0
    %124 = vmatpush1.msra.mxu0 0.0
    %125 = vmatprep.subr.mxu0 0.0
    %126 = vmatpush1.msra.mxu0 0.0
    %127 = vmatprep.subr.mxu0 0.0
    %128 = vmatpush1.msra.mxu0 0.0
    %129 = vmatprep.subr.mxu0 0.0
    %130 = vmatpush1.msra.mxu0 0.0
    %131 = vmatprep.subr.mxu0 0.0
    %132 = vmatpush1.msra.mxu0 0.0
    %133 = vmatprep.subr.mxu0 0.0
    %134 = vmatpush1.msra.mxu0 0.0
    %135 = vmatprep.subr.mxu0 0.0
    %136 = vmatpush1.msra.mxu0 0.0
    %137 = vmatprep.subr.mxu0 0.0
    %138 = vmatpush1.msra.mxu0 0.0
    %139 = vmatprep.subr.mxu0 0.0
    %140 = vmatpush1.msra.mxu0 0.0
    %141 = vmatprep.subr.mxu0 0.0
    %142 = vmatpush1.msra.mxu0 0.0
    %143 = vmatprep.subr.mxu0 0.0
    %144 = vmatpush1.msra.mxu0 0.0
    %145 = vmatprep.subr.mxu0 0.0
    %146 = vmatpush1.msra.mxu0 0.0
    %147 = vmatprep.subr.mxu0 0.0
    %148 = vmatpush1.msra.mxu0 0.0
    %149 = vmatprep.subr.mxu0 0.0
    %150 = vmatpush1.msra.mxu0 0.0
    %151 = vmatprep.subr.mxu0 0.0
    %152 = vmatpush1.msra.mxu0 0.0
    %153 = vmatprep.subr.mxu0 0.0
    %154 = vmatpush1.msra.mxu0 0.0
    %155 = vmatprep.subr.mxu0 0.0
    %156 = vmatpush1.msra.mxu0 0.0
    %157 = vmatprep.subr.mxu0 0.0
    %158 = vmatpush1.msra.mxu0 0.0
    %159 = vmatprep.subr.mxu0 0.0
    %160 = vmatpush1.msra.mxu0 0.0
    %161 = vmatprep.subr.mxu0 0.0
    %162 = vmatpush1.msra.mxu0 0.0
    %163 = vmatprep.subr.mxu0 0.0
    %164 = vmatpush1.msra.mxu0 0.0
    %165 = vmatprep.subr.mxu0 0.0
    %166 = vmatpush1.msra.mxu0 0.0
    %167 = vmatprep.subr.mxu0 0.0
    %168 = vmatpush1.msra.mxu0 0.0
    %169 = vmatprep.subr.mxu0 0.0
    %170 = vmatpush1.msra.mxu0 0.0
    %171 = vmatprep.subr.mxu0 0.0
    %172 = vmatpush1.msra.mxu0 0.0
    %173 = vmatprep.subr.mxu0 0.0
    %174 = vmatpush1.msra.mxu0 0.0
    %175 = vmatprep.mubr.f32.mxu0 0.0
    %176 = vmatmul.mubr.f32.gmra.mrb[0].mxu0 %v102
    %v177 = vpop.f32.mrb[0].mxu0
    %v178 = vadd.f32 %v98, %v177
    %v179 = vpop.f32.mrb[0].mxu0
    %180 = vmatprep.mubr.f32.mxu0 0.0
    %181 = vmatmul.mubr.f32.gmra.mrb[0].mxu0 %v105
    %v182 = vpop.f32.mrb[0].mxu0
    %v183 = vadd.f32 %v98, %v182
    %v184 = vpop.f32.mrb[0].mxu0
    %185 = vdwg.mxu0
    %v186 = vmax.f32 %v178, 0.0
    %v187 = vmax.f32 %v183, 0.0
    %v188 = vld [vmem:[#allocation7] sm:$0xff]
    %v189 = vld [vmem:[#allocation7 + $0x8] sm:$0xff]
    %v190 = vld [vmem:[#allocation7 + $0x10] sm:$0xff]
    %v191 = vld [vmem:[#allocation7 + $0x18] sm:$0xff]
    %v192 = vld [vmem:[#allocation7 + $0x20] sm:$0xff]
    %v193 = vld [vmem:[#allocation7 + $0x28] sm:$0xff]
    %v194 = vld [vmem:[#allocation7 + $0x30] sm:$0xff]
    %v195 = vld [vmem:[#allocation7 + $0x38] sm:$0xff]
    %v196 = vld [vmem:[#allocation7 + $0x40] sm:$0xff]
    %v197 = vld [vmem:[#allocation7 + $0x48] sm:$0xff]
    %v198 = vld [vmem:[#allocation7 + $0x50] sm:$0xff]
    %v199 = vld [vmem:[#allocation7 + $0x58] sm:$0xff]
    %v200 = vld [vmem:[#allocation7 + $0x60] sm:$0xff]
    %v201 = vld [vmem:[#allocation7 + $0x68] sm:$0xff]
    %v202 = vld [vmem:[#allocation7 + $0x70] sm:$0xff]
    %v203 = vld [vmem:[#allocation7 + $0x78] sm:$0xff]
    %v204 = vld [vmem:[%s4] sm:$0x1]
    %v206 = vlaneseq
    %v207 = vshrl.u32 %v206, 7
    %v208 = vsub.s32 0, %v207
    %v209 = vrot.slane %v204, %v208
    %211 = vmatprep.subr.mxu0 0.0
    %212 = vmatpush1.msra.mxu0 %v188
    %213 = vmatprep.subr.mxu0 0.0
    %214 = vmatpush1.msra.mxu0 %v189
    %215 = vmatprep.subr.mxu0 0.0
    %216 = vmatpush1.msra.mxu0 %v190
    %217 = vmatprep.subr.mxu0 0.0
    %218 = vmatpush1.msra.mxu0 %v191
    %219 = vmatprep.subr.mxu0 0.0
    %220 = vmatpush1.msra.mxu0 %v192
    %221 = vmatprep.subr.mxu0 0.0
    %222 = vmatpush1.msra.mxu0 %v193
    %223 = vmatprep.subr.mxu0 0.0
    %224 = vmatpush1.msra.mxu0 %v194
    %225 = vmatprep.subr.mxu0 0.0
    %226 = vmatpush1.msra.mxu0 %v195
    %227 = vmatprep.subr.mxu0 0.0
    %228 = vmatpush1.msra.mxu0 %v196
    %229 = vmatprep.subr.mxu0 0.0
    %230 = vmatpush1.msra.mxu0 %v197
    %231 = vmatprep.subr.mxu0 0.0
    %232 = vmatpush1.msra.mxu0 %v198
    %233 = vmatprep.subr.mxu0 0.0
    %234 = vmatpush1.msra.mxu0 %v199
    %235 = vmatprep.subr.mxu0 0.0
    %236 = vmatpush1.msra.mxu0 %v200
    %237 = vmatprep.subr.mxu0 0.0
    %238 = vmatpush1.msra.mxu0 %v201
    %239 = vmatprep.subr.mxu0 0.0
    %240 = vmatpush1.msra.mxu0 %v202
    %241 = vmatprep.subr.mxu0 0.0
    %242 = vmatpush1.msra.mxu0 %v203
    %243 = vmatprep.subr.mxu0 0.0
    %244 = vmatpush1.msra.mxu0 0.0
    %245 = vmatprep.subr.mxu0 0.0
    %246 = vmatpush1.msra.mxu0 0.0
    %247 = vmatprep.subr.mxu0 0.0
    %248 = vmatpush1.msra.mxu0 0.0
    %249 = vmatprep.subr.mxu0 0.0
    %250 = vmatpush1.msra.mxu0 0.0
    %251 = vmatprep.subr.mxu0 0.0
    %252 = vmatpush1.msra.mxu0 0.0
    %253 = vmatprep.subr.mxu0 0.0
    %254 = vmatpush1.msra.mxu0 0.0
    %255 = vmatprep.subr.mxu0 0.0
    %256 = vmatpush1.msra.mxu0 0.0
    %257 = vmatprep.subr.mxu0 0.0
    %258 = vmatpush1.msra.mxu0 0.0
    %259 = vmatprep.subr.mxu0 0.0
    %260 = vmatpush1.msra.mxu0 0.0
    %261 = vmatprep.subr.mxu0 0.0
    %262 = vmatpush1.msra.mxu0 0.0
    %263 = vmatprep.subr.mxu0 0.0
    %264 = vmatpush1.msra.mxu0 0.0
    %265 = vmatprep.subr.mxu0 0.0
    %266 = vmatpush1.msra.mxu0 0.0
    %267 = vmatprep.subr.mxu0 0.0
    %268 = vmatpush1.msra.mxu0 0.0
    %269 = vmatprep.subr.mxu0 0.0
    %270 = vmatpush1.msra.mxu0 0.0
    %271 = vmatprep.subr.mxu0 0.0
    %272 = vmatpush1.msra.mxu0 0.0
    %273 = vmatprep.subr.mxu0 0.0
    %274 = vmatpush1.msra.mxu0 0.0
    %275 = vmatprep.mubr.f32.mxu0 0.0
    %276 = vmatmul.mubr.f32.gmra.mrb[0].mxu0 %v186
    %v277 = vpop.f32.mrb[0].mxu0
    %v278 = vadd.f32 %v209, %v277
    %v279 = vpop.f32.mrb[0].mxu0
    %280 = vmatprep.mubr.f32.mxu0 0.0
    %281 = vmatmul.mubr.f32.gmra.mrb[0].mxu0 %v187
    %v282 = vpop.f32.mrb[0].mxu0
    %v283 = vadd.f32 %v209, %v282
    %v284 = vpop.f32.mrb[0].mxu0
    %285 = vdwg.mxu0
    %v286 = vmax.f32 %v278, 0.0
    %v287 = vmax.f32 %v283, 0.0
    %v288 = vld [vmem:[#allocation8] sm:$0xff]
    %v289 = vld [vmem:[#allocation8 + $0x8] sm:$0xff]
    %v290 = vld [vmem:[#allocation8 + $0x10] sm:$0xff]
    %v291 = vld [vmem:[#allocation8 + $0x18] sm:$0xff]
    %v292 = vld [vmem:[#allocation8 + $0x20] sm:$0xff]
    %v293 = vld [vmem:[#allocation8 + $0x28] sm:$0xff]
    %v294 = vld [vmem:[#allocation8 + $0x30] sm:$0xff]
    %v295 = vld [vmem:[#allocation8 + $0x38] sm:$0xff]
    %v296 = vld [vmem:[#allocation8 + $0x40] sm:$0xff]
    %v297 = vld [vmem:[#allocation8 + $0x48] sm:$0xff]
    %v298 = vld [vmem:[#allocation8 + $0x50] sm:$0xff]
    %v299 = vld [vmem:[#allocation8 + $0x58] sm:$0xff]
    %v300 = vld [vmem:[#allocation8 + $0x60] sm:$0xff]
    %v301 = vld [vmem:[#allocation8 + $0x68] sm:$0xff]
    %v302 = vld [vmem:[#allocation8 + $0x70] sm:$0xff]
    %v303 = vld [vmem:[#allocation8 + $0x78] sm:$0xff]
    %v304 = vld [vmem:[%s6] sm:$0x1]
    %v306 = vlaneseq
    %v307 = vshrl.u32 %v306, 7
    %v308 = vsub.s32 0, %v307
    %v309 = vrot.slane %v304, %v308
    %311 = vmatprep.subr.mxu0 0.0
    %312 = vmatpush1.msra.mxu0 %v288
    %313 = vmatprep.subr.mxu0 0.0
    %314 = vmatpush1.msra.mxu0 %v289
    %315 = vmatprep.subr.mxu0 0.0
    %316 = vmatpush1.msra.mxu0 %v290
    %317 = vmatprep.subr.mxu0 0.0
    %318 = vmatpush1.msra.mxu0 %v291
    %319 = vmatprep.subr.mxu0 0.0
    %320 = vmatpush1.msra.mxu0 %v292
    %321 = vmatprep.subr.mxu0 0.0
    %322 = vmatpush1.msra.mxu0 %v293
    %323 = vmatprep.subr.mxu0 0.0
    %324 = vmatpush1.msra.mxu0 %v294
    %325 = vmatprep.subr.mxu0 0.0
    %326 = vmatpush1.msra.mxu0 %v295
    %327 = vmatprep.subr.mxu0 0.0
    %328 = vmatpush1.msra.mxu0 %v296
    %329 = vmatprep.subr.mxu0 0.0
    %330 = vmatpush1.msra.mxu0 %v297
    %331 = vmatprep.subr.mxu0 0.0
    %332 = vmatpush1.msra.mxu0 %v298
    %333 = vmatprep.subr.mxu0 0.0
    %334 = vmatpush1.msra.mxu0 %v299
    %335 = vmatprep.subr.mxu0 0.0
    %336 = vmatpush1.msra.mxu0 %v300
    %337 = vmatprep.subr.mxu0 0.0
    %338 = vmatpush1.msra.mxu0 %v301
    %339 = vmatprep.subr.mxu0 0.0
    %340 = vmatpush1.msra.mxu0 %v302
    %341 = vmatprep.subr.mxu0 0.0
    %342 = vmatpush1.msra.mxu0 %v303
    %343 = vmatprep.subr.mxu0 0.0
    %344 = vmatpush1.msra.mxu0 0.0
    %345 = vmatprep.subr.mxu0 0.0
    %346 = vmatpush1.msra.mxu0 0.0
    %347 = vmatprep.subr.mxu0 0.0
    %348 = vmatpush1.msra.mxu0 0.0
    %349 = vmatprep.subr.mxu0 0.0
    %350 = vmatpush1.msra.mxu0 0.0
    %351 = vmatprep.subr.mxu0 0.0
    %352 = vmatpush1.msra.mxu0 0.0
    %353 = vmatprep.subr.mxu0 0.0
    %354 = vmatpush1.msra.mxu0 0.0
    %355 = vmatprep.subr.mxu0 0.0
    %356 = vmatpush1.msra.mxu0 0.0
    %357 = vmatprep.subr.mxu0 0.0
    %358 = vmatpush1.msra.mxu0 0.0
    %359 = vmatprep.subr.mxu0 0.0
    %360 = vmatpush1.msra.mxu0 0.0
    %361 = vmatprep.subr.mxu0 0.0
    %362 = vmatpush1.msra.mxu0 0.0
    %363 = vmatprep.subr.mxu0 0.0
    %364 = vmatpush1.msra.mxu0 0.0
    %365 = vmatprep.subr.mxu0 0.0
    %366 = vmatpush1.msra.mxu0 0.0
    %367 = vmatprep.subr.mxu0 0.0
    %368 = vmatpush1.msra.mxu0 0.0
    %369 = vmatprep.subr.mxu0 0.0
    %370 = vmatpush1.msra.mxu0 0.0
    %371 = vmatprep.subr.mxu0 0.0
    %372 = vmatpush1.msra.mxu0 0.0
    %373 = vmatprep.subr.mxu0 0.0
    %374 = vmatpush1.msra.mxu0 0.0
    %375 = vmatprep.mubr.f32.mxu0 0.0
    %376 = vmatmul.mubr.f32.gmra.mrb[0].mxu0 %v286
    %v377 = vpop.f32.mrb[0].mxu0
    %v378 = vadd.f32 %v309, %v377
    %v379 = vpop.f32.mrb[0].mxu0
    %380 = vmatprep.mubr.f32.mxu0 0.0
    %381 = vmatmul.mubr.f32.gmra.mrb[0].mxu0 %v287
    %v382 = vpop.f32.mrb[0].mxu0
    %v383 = vadd.f32 %v309, %v382
    %v384 = vpop.f32.mrb[0].mxu0
    %385 = vdwg.mxu0
    %v386 = vmax.f32 %v378, 0.0
    %v387 = vmax.f32 %v383, 0.0
    %v388 = vld [vmem:[%s7] sm:$0x1]
    %v390 = vlaneseq
    %v391 = vshrl.u32 %v390, 7
    %v392 = vsub.s32 0, %v391
    %v393 = vrot.slane %v388, %v392
    %v395 = vmul.f32 %v386, %v393
    %v396 = vmul.f32 %v387, %v393
    %397 = vadd.xlane.f32.xlu0 %v395
    %v398 = vpop.xlane.xlu0 %397
    %399 = vadd.xlane.f32.xlu0 %v396
    %v400 = vpop.xlane.xlu0 %399
    %v401 = vld [vmem:[#allocation2] sm:$0x1]
    %v403 = vlaneseq
    %v404 = vshrl.u32 %v403, 7
    %v405 = vsub.s32 0, %v404
    %v406 = vrot.slane %v401, %v405
    %v408 = vadd.f32 %v398, %v406
    %v409 = vadd.f32 %v400, %v406
    %v410 = vxor.u32 %v408, 2147483648
    %v411 = vxor.u32 %v409, 2147483648
    %v412 = vmul.f32 %v410, 1.442695
    %v413 = vpow.pop %v412
    %v414 = vmul.f32 %v411, 1.442695
    %v415 = vpow.pop %v414
    %v416 = vadd.f32 %v413, 1.0
    %v417 = vadd.f32 %v415, 1.0
    %v418 = vrcp.pop %v416
    %v419 = vmul.f32 1.0, %v418
    %v420 = vrcp.pop %v417
    %v421 = vmul.f32 1.0, %v420
    %vm422 = vcmask 7168
    %423 = vst.msk [vmem:[%s9] sm:$0xff] %vm422, %v419
    %424 = vst.msk [vmem:[%s9 + $0x8] sm:$0xff] %vm422, %v421
    // Predicated region
    $region54: #{tpu_custom_call.1} parent=1 // pred_check
      _
    $region55: #{tpu_custom_call.1} parent=1 // pred_check_branch
      %426 = sbr.rel (0) target = $region57
    $region56: #{tpu_custom_call.1} parent=1 // pred_region
      _
    $region57: #{tpu_custom_call.1} parent=1 // pred_fallthru
      _
    // Predicated region
    $region58: #{tpu_custom_call.1} parent=1 // pred_check
      _
    $region59: #{tpu_custom_call.1} parent=1 // pred_check_branch
      %428 = sbr.rel (0) target = $region61
    $region60: #{tpu_custom_call.1} parent=1 // pred_region
      _
    $region61: #{tpu_custom_call.1} parent=1 // pred_fallthru
      _
    %429 = vsyncpa [#allocation4], 1
    %430 = vsyncpa [#allocation6], 1
    %431 = vsyncpa [#allocation9], 1

</llo_original>
